<compile_context>
chip_gen: v5e
topology: v5e:2x2
jax: 0.10.0
libtpu: 0.0.40
codegen_flags: <defaults>
</compile_context>

<pallas_src>
import math
import functools

import jax
import jax.numpy as jnp
from jax.experimental import pallas as pl
from jax.experimental.pallas import tpu as pltpu


# -----------------------------------------------------------------------------
# Kernel 1 (runs ONCE, no grid): per-step time-conditioning bias table.
#   bias[s] = Lin2(SiLU(Lin1(TimeEmb(t_s)))) @ wt + bt + b1          [S, Ch]
# with t_s = min(s, n_steps-2) * delta_t  (last step reuses stale t_emb).
# -----------------------------------------------------------------------------
def _time_bias_kernel(scale, t_ref, invf_ref, w1_ref, b1_ref, w2_ref, b2_ref,
                      wt_ref, bt_ref, sb1_ref, out_ref):
    t = t_ref[...] * scale + 1.0                                        # [S, 1]
    sin_in = t * invf_ref[...]                                          # [S, D/2]
    emb = jnp.concatenate([jnp.sin(sin_in), jnp.cos(sin_in)], axis=-1)  # [S, D]
    h = jnp.dot(emb, w1_ref[...], preferred_element_type=jnp.float32) + b1_ref[...]
    h = h * jax.nn.sigmoid(h)                                           # SiLU
    temb = jnp.dot(h, w2_ref[...], preferred_element_type=jnp.float32) + b2_ref[...]
    out_ref[...] = (jnp.dot(temb, wt_ref[...], preferred_element_type=jnp.float32)
                    + bt_ref[...] + sb1_ref[...])                       # [S, Ch]


def precompute_step_bias(params, *, n_steps):
    delta_t = 1.0 / n_steps
    steps = jnp.arange(n_steps, dtype=jnp.float32)
    # step s uses t = min(s, n_steps-2) * delta_t (stale t_emb on last step)
    t_used = jnp.minimum(steps, float(n_steps - 2)) * delta_t
    S = n_steps
    D = params["time_w1"].shape[0]
    sp = params["shift"]
    Ch = sp["wt"].shape[1]
    bias = pl.pallas_call(
        functools.partial(_time_bias_kernel, float(n_steps)),
        out_shape=jax.ShapeDtypeStruct((S, Ch), jnp.float32),
    )(t_used.reshape(S, 1),
      params["inv_freq"].reshape(1, -1),
      params["time_w1"], params["time_b1"].reshape(1, D),
      params["time_w2"], params["time_b2"].reshape(1, D),
      sp["wt"], sp["bt"].reshape(1, Ch), sp["b1"].reshape(1, Ch))
    # [S, Ch, 1]: channels on sublanes so the Euler kernel broadcasts the bias
    # straight across the lane (pixel) axis with no in-kernel transpose.
    return bias.reshape(S, Ch, 1)


# -----------------------------------------------------------------------------
# Kernel 2 (the whole Euler loop): grid=(n_steps,), x resident in VMEM.
#   x <- x + delta_t * conv1x1_2( SiLU( conv1x1_1(x) + bias[step] ) ) [+ noise]
# Channels-first: x, out are [C, N] with N = B*H*W on the lane axis.
# -----------------------------------------------------------------------------
def _sde_fused_kernel(delta_t, noise_scale, has_noise, has_traj,
                      x0_ref, bias_ref, w1t_ref, w2t_ref, b2_ref, *rest):
    idx = 0
    noise_ref = None
    if has_noise:
        noise_ref = rest[idx]
        idx += 1
    out_ref = rest[idx]
    idx += 1
    traj_ref = rest[idx] if has_traj else None

    s = pl.program_id(0)

    @pl.when(s == 0)
    def _():
        out_ref[...] = x0_ref[...]          # initialize the resident accumulator

    x = out_ref[...]                                            # [C, N]
    h = (jnp.dot(w1t_ref[...], x, preferred_element_type=jnp.float32)
         + bias_ref[0])                                         # [Ch, N]
    h = h * jax.nn.sigmoid(h)                                   # SiLU
    shift = (jnp.dot(w2t_ref[...], h, preferred_element_type=jnp.float32)
             + b2_ref[...])                                     # [C, N]
    x_new = x + delta_t * shift
    if has_noise:
        # noise on every step except the last (matches the PyTorch loop)
        is_last = s == pl.num_programs(0) - 1
        x_new = x_new + jnp.where(is_last, 0.0, noise_scale) * noise_ref[0]
    out_ref[...] = x_new
    if has_traj:
        traj_ref[0] = x_new


# -----------------------------------------------------------------------------
# SDE.forward
# -----------------------------------------------------------------------------
@functools.partial(jax.jit, static_argnames=("n_steps", "gamma", "traj"))
def sde_forward(x0_nchw, params, rng=None, *, n_steps, gamma=0.0, traj=False):
    assert n_steps >= 2, "SDE.forward requires n_steps >= 2 (t_emb undefined otherwise)"
    B, C, H, W = x0_nchw.shape
    N = B * H * W
    delta_t = 1.0 / n_steps
    noise_scale = math.sqrt(gamma * delta_t)
    has_noise = noise_scale > 0.0
    if has_noise and rng is None:
        raise ValueError("rng key required when gamma > 0")

    # NCHW -> channels-first flattened [C, B*H*W] (lane-dense pixel axis).
    x0 = jnp.transpose(x0_nchw.astype(jnp.float32), (1, 0, 2, 3)).reshape(C, N)

    # Time MLP + projection into the shift model, once for all steps.
    bias = precompute_step_bias(params, n_steps=n_steps)        # [S, Ch, 1]

    sp = params["shift"]
    w1t = sp["w1"].T                                            # [Ch, C]
    w2t = sp["w2"].T                                            # [C, Ch]
    b2 = sp["b2"].reshape(C, 1)                                 # [C, 1]
    Ch = w1t.shape[0]

    in_arrays = [x0, bias, w1t, w2t, b2]
    in_specs = [
        pl.BlockSpec((C, N), lambda s: (0, 0)),          # x0: loaded once
        pl.BlockSpec((1, Ch, 1), lambda s: (s, 0, 0)),   # per-step bias row
        pl.BlockSpec((Ch, C), lambda s: (0, 0)),
        pl.BlockSpec((C, Ch), lambda s: (0, 0)),
        pl.BlockSpec((C, 1), lambda s: (0, 0)),
    ]
    if has_noise:
        noise = jax.random.normal(rng, (n_steps, C, N), jnp.float32)
        in_arrays.append(noise)
        in_specs.append(pl.BlockSpec((1, C, N), lambda s: (s, 0, 0)))

    out_shape = [jax.ShapeDtypeStruct((C, N), jnp.float32)]
    out_specs = [pl.BlockSpec((C, N), lambda s: (0, 0))]         # VMEM-resident x
    if traj:
        out_shape.append(jax.ShapeDtypeStruct((n_steps, C, N), jnp.float32))
        out_specs.append(pl.BlockSpec((1, C, N), lambda s: (s, 0, 0)))

    outs = pl.pallas_call(
        functools.partial(_sde_fused_kernel, float(delta_t), float(noise_scale),
                          has_noise, traj),
        grid=(n_steps,),
        in_specs=in_specs,
        out_specs=tuple(out_specs),
        out_shape=tuple(out_shape),
        compiler_params=pltpu.CompilerParams(
            dimension_semantics=("arbitrary",)),
    )(*in_arrays)

    def to_nchw(x_cn):  # [C, B*H*W] -> NCHW
        return jnp.transpose(x_cn.reshape(C, B, H, W), (1, 0, 2, 3))

    out = to_nchw(outs[0])
    if traj:
        traj_steps = outs[1]                                     # [S, C, N]
        trajectory = [x0_nchw.astype(jnp.float32)] + [
            to_nchw(traj_steps[s]) for s in range(n_steps)]
        return out, trajectory
    return out


# -----------------------------------------------------------------------------
# Pure-JAX reference (mirrors the PyTorch SDE.forward, gamma = 0) for checking.
# -----------------------------------------------------------------------------
def sde_forward_ref(x0, params, *, n_steps):
    B, C, H, W = x0.shape
    delta_t = 1.0 / n_steps
    sp = params["shift"]
    x = x0.astype(jnp.float32)
    t = jnp.zeros((B,), jnp.float32)
    t_emb = None
    for step in range(n_steps):
        if step < n_steps - 1:
            ti = t * n_steps + 1.0
            sin_in = ti[:, None] * params["inv_freq"][None, :]
            emb = jnp.concatenate([jnp.sin(sin_in), jnp.cos(sin_in)], axis=-1)
            h = emb @ params["time_w1"] + params["time_b1"]
            h = h * jax.nn.sigmoid(h)
            t_emb = h @ params["time_w2"] + params["time_b2"]
        tproj = t_emb @ sp["wt"] + sp["bt"]                     # [B, Ch]
        xc = jnp.transpose(x, (0, 2, 3, 1)).reshape(B, H * W, C)
        hh = xc @ sp["w1"] + sp["b1"] + tproj[:, None, :]
        hh = hh * jax.nn.sigmoid(hh)
        shift = (hh @ sp["w2"] + sp["b2"]).reshape(B, H, W, C)
        x = x + delta_t * jnp.transpose(shift, (0, 3, 1, 2))
        t = t + delta_t
    return x


# -----------------------------------------------------------------------------
if __name__ == "__main__":
    B, C, H, W = 2, 4, 16, 16
    n_steps, time_dim, hidden = 4, 32, 8

    key = jax.random.PRNGKey(0)
    ks = jax.random.split(key, 10)

    inv_freq = jnp.exp(jnp.arange(0, time_dim, 2, dtype=jnp.float32)
                       * (-math.log(10000.0) / time_dim))

    params = {
        "inv_freq": inv_freq,
        "time_w1": 0.1 * jax.random.normal(ks[0], (time_dim, time_dim), jnp.float32),
        "time_b1": 0.1 * jax.random.normal(ks[1], (time_dim,), jnp.float32),
        "time_w2": 0.1 * jax.random.normal(ks[2], (time_dim, time_dim), jnp.float32),
        "time_b2": 0.1 * jax.random.normal(ks[3], (time_dim,), jnp.float32),
        "shift": {  # synthetic time-conditioned 1x1-conv shift model
            "wt": 0.1 * jax.random.normal(ks[4], (time_dim, hidden), jnp.float32),
            "bt": 0.1 * jax.random.normal(ks[5], (1, hidden), jnp.float32),
            "w1": 0.1 * jax.random.normal(ks[6], (C, hidden), jnp.float32),
            "b1": 0.1 * jax.random.normal(ks[7], (1, hidden), jnp.float32),
            "w2": 0.1 * jax.random.normal(ks[8], (hidden, C), jnp.float32),
            "b2": 0.1 * jax.random.normal(ks[9], (1, C), jnp.float32),
        },
    }

    x0 = jax.random.normal(jax.random.PRNGKey(1), (B, C, H, W), jnp.float32)

    out = sde_forward(x0, params, n_steps=n_steps, gamma=0.0)
    out = jax.block_until_ready(out)

    ref = sde_forward_ref(x0, params, n_steps=n_steps)
    assert out.shape == (B, C, H, W)
    assert bool(jnp.all(jnp.isfinite(out)))
    err = float(jnp.max(jnp.abs(out - ref)))
    assert err < 1e-4, f"mismatch vs reference: max abs err = {err}"
    print("KERNEL_OK")
</pallas_src>

<mosaic_0001>
module attributes {stable_mosaic.version = 11 : i64} {
  func.func @_time_bias_kernel(%arg0: memref<4x1xf32, #tpu.memory_space<vmem>>, %arg1: memref<1x16xf32, #tpu.memory_space<vmem>>, %arg2: memref<32x32xf32, #tpu.memory_space<vmem>>, %arg3: memref<1x32xf32, #tpu.memory_space<vmem>>, %arg4: memref<32x32xf32, #tpu.memory_space<vmem>>, %arg5: memref<1x32xf32, #tpu.memory_space<vmem>>, %arg6: memref<32x8xf32, #tpu.memory_space<vmem>>, %arg7: memref<1x8xf32, #tpu.memory_space<vmem>>, %arg8: memref<1x8xf32, #tpu.memory_space<vmem>>, %arg9: memref<4x8xf32, #tpu.memory_space<vmem>>) attributes {dimension_semantics = [], scalar_prefetch = 0 : i64, scratch_operands = 0 : i64, tpu.core_type = #tpu.core_type<tc>} {
    %c0 = arith.constant 0 : index
    %c0_0 = arith.constant 0 : index
    %0 = vector.load %arg0[%c0, %c0_0] : memref<4x1xf32, #tpu.memory_space<vmem>>, vector<4x1xf32>
    %cst = arith.constant 4.000000e+00 : f32
    %1 = vector.broadcast %cst : f32 to vector<4x1xf32>
    %2 = arith.mulf %0, %1 : vector<4x1xf32>
    %cst_1 = arith.constant 1.000000e+00 : f32
    %3 = vector.broadcast %cst_1 : f32 to vector<4x1xf32>
    %4 = arith.addf %2, %3 : vector<4x1xf32>
    %c0_2 = arith.constant 0 : index
    %c0_3 = arith.constant 0 : index
    %5 = vector.load %arg1[%c0_2, %c0_3] : memref<1x16xf32, #tpu.memory_space<vmem>>, vector<1x16xf32>
    %6 = vector.broadcast %4 : vector<4x1xf32> to vector<4x16xf32>
    %7 = vector.broadcast %5 : vector<1x16xf32> to vector<4x16xf32>
    %8 = arith.mulf %6, %7 : vector<4x16xf32>
    %9 = math.sin %8 : vector<4x16xf32>
    %10 = math.cos %8 : vector<4x16xf32>
    %11 = tpu.concatenate %9, %10 in 1 : vector<4x16xf32>, vector<4x16xf32> -> vector<4x32xf32>
    %c0_4 = arith.constant 0 : index
    %c0_5 = arith.constant 0 : index
    %12 = vector.load %arg2[%c0_4, %c0_5] : memref<32x32xf32, #tpu.memory_space<vmem>>, vector<32x32xf32>
    %cst_6 = arith.constant dense<0.000000e+00> : vector<4x32xf32>
    %13 = tpu.matmul %11, %12, %cst_6 {dimension_numbers = #tpu.dot_dimension_numbers<[1], [0], [0], [1], [0, 0, 1, 1], [], []>} : vector<4x32xf32>, vector<32x32xf32>, vector<4x32xf32> -> vector<4x32xf32>
    %c0_7 = arith.constant 0 : index
    %c0_8 = arith.constant 0 : index
    %14 = vector.load %arg3[%c0_7, %c0_8] : memref<1x32xf32, #tpu.memory_space<vmem>>, vector<1x32xf32>
    %15 = vector.broadcast %14 : vector<1x32xf32> to vector<4x32xf32>
    %16 = arith.addf %13, %15 : vector<4x32xf32>
    %17 = arith.negf %16 : vector<4x32xf32>
    %18 = math.exp %17 : vector<4x32xf32>
    %cst_9 = arith.constant 1.000000e+00 : f32
    %19 = vector.broadcast %cst_9 : f32 to vector<4x32xf32>
    %20 = arith.addf %19, %18 : vector<4x32xf32>
    %21 = arith.divf %19, %20 : vector<4x32xf32>
    %22 = arith.mulf %16, %21 : vector<4x32xf32>
    %c0_10 = arith.constant 0 : index
    %c0_11 = arith.constant 0 : index
    %23 = vector.load %arg4[%c0_10, %c0_11] : memref<32x32xf32, #tpu.memory_space<vmem>>, vector<32x32xf32>
    %cst_12 = arith.constant dense<0.000000e+00> : vector<4x32xf32>
    %24 = tpu.matmul %22, %23, %cst_12 {dimension_numbers = #tpu.dot_dimension_numbers<[1], [0], [0], [1], [0, 0, 1, 1], [], []>} : vector<4x32xf32>, vector<32x32xf32>, vector<4x32xf32> -> vector<4x32xf32>
    %c0_13 = arith.constant 0 : index
    %c0_14 = arith.constant 0 : index
    %25 = vector.load %arg5[%c0_13, %c0_14] : memref<1x32xf32, #tpu.memory_space<vmem>>, vector<1x32xf32>
    %26 = vector.broadcast %25 : vector<1x32xf32> to vector<4x32xf32>
    %27 = arith.addf %24, %26 : vector<4x32xf32>
    %c0_15 = arith.constant 0 : index
    %c0_16 = arith.constant 0 : index
    %28 = vector.load %arg6[%c0_15, %c0_16] : memref<32x8xf32, #tpu.memory_space<vmem>>, vector<32x8xf32>
    %cst_17 = arith.constant dense<0.000000e+00> : vector<4x8xf32>
    %29 = tpu.matmul %27, %28, %cst_17 {dimension_numbers = #tpu.dot_dimension_numbers<[1], [0], [0], [1], [0, 0, 1, 1], [], []>} : vector<4x32xf32>, vector<32x8xf32>, vector<4x8xf32> -> vector<4x8xf32>
    %c0_18 = arith.constant 0 : index
    %c0_19 = arith.constant 0 : index
    %30 = vector.load %arg7[%c0_18, %c0_19] : memref<1x8xf32, #tpu.memory_space<vmem>>, vector<1x8xf32>
    %31 = vector.broadcast %30 : vector<1x8xf32> to vector<4x8xf32>
    %32 = arith.addf %29, %31 : vector<4x8xf32>
    %c0_20 = arith.constant 0 : index
    %c0_21 = arith.constant 0 : index
    %33 = vector.load %arg8[%c0_20, %c0_21] : memref<1x8xf32, #tpu.memory_space<vmem>>, vector<1x8xf32>
    %34 = vector.broadcast %33 : vector<1x8xf32> to vector<4x8xf32>
    %35 = arith.addf %32, %34 : vector<4x8xf32>
    %c0_22 = arith.constant 0 : index
    %c0_23 = arith.constant 0 : index
    %36 = vector.load %arg9[%c0_22, %c0_23] : memref<4x8xf32, #tpu.memory_space<vmem>>, vector<4x8xf32>
    tpu.vector_store %arg9[%c0_22, %c0_23], %35 {strides = array<i32>} : memref<4x8xf32, #tpu.memory_space<vmem>>, vector<4x8xf32>,
    return
  }
}

module attributes {stable_mosaic.version = 11 : i64} {
  func.func @_sde_fused_kernel(%arg0: i32, %arg1: memref<4x512xf32, #tpu.memory_space<vmem>>, %arg2: memref<1x8x1xf32, #tpu.memory_space<vmem>>, %arg3: memref<8x4xf32, #tpu.memory_space<vmem>>, %arg4: memref<4x8xf32, #tpu.memory_space<vmem>>, %arg5: memref<4x1xf32, #tpu.memory_space<vmem>>, %arg6: memref<4x512xf32, #tpu.memory_space<vmem>>) attributes {dimension_semantics = [#tpu.dimension_semantics<arbitrary>], iteration_bounds = array<i64: 4>, scalar_prefetch = 0 : i64, scratch_operands = 0 : i64, tpu.core_type = #tpu.core_type<tc>, window_params = [{pipeline_mode = #tpu.pipeline_mode<synchronous>, transform_indices = @transform_0, window_bounds = array<i64: 4, 512>}, {transform_indices = @transform_1, window_bounds = array<i64: 1, 8, 1>}, {pipeline_mode = #tpu.pipeline_mode<synchronous>, transform_indices = @transform_2, window_bounds = array<i64: 8, 4>}, {pipeline_mode = #tpu.pipeline_mode<synchronous>, transform_indices = @transform_3, window_bounds = array<i64: 4, 8>}, {pipeline_mode = #tpu.pipeline_mode<synchronous>, transform_indices = @transform_4, window_bounds = array<i64: 4, 1>}, {pipeline_mode = #tpu.pipeline_mode<synchronous>, transform_indices = @transform_5, window_bounds = array<i64: 4, 512>}]} {
    %c0_i32 = arith.constant 0 : i32
    %0 = arith.cmpi eq, %arg0, %c0_i32 : i32
    %1 = arith.extui %0 : i1 to i32
    %c0_i32_0 = arith.constant 0 : i32
    %2 = arith.cmpi ne, %1, %c0_i32_0 : i32
    scf.if %2 {
      %c0_16 = arith.constant 0 : index
      %c0_17 = arith.constant 0 : index
      %25 = vector.load %arg1[%c0_16, %c0_17] : memref<4x512xf32, #tpu.memory_space<vmem>>, vector<4x512xf32>
      %c0_18 = arith.constant 0 : index
      %c0_19 = arith.constant 0 : index
      %26 = vector.load %arg6[%c0_18, %c0_19] : memref<4x512xf32, #tpu.memory_space<vmem>>, vector<4x512xf32>
      tpu.vector_store %arg6[%c0_18, %c0_19], %25 {strides = array<i32>} : memref<4x512xf32, #tpu.memory_space<vmem>>, vector<4x512xf32>,
    } else {
    }
    %c0 = arith.constant 0 : index
    %c0_1 = arith.constant 0 : index
    %3 = vector.load %arg6[%c0, %c0_1] : memref<4x512xf32, #tpu.memory_space<vmem>>, vector<4x512xf32>
    %c0_2 = arith.constant 0 : index
    %c0_3 = arith.constant 0 : index
    %4 = vector.load %arg3[%c0_2, %c0_3] : memref<8x4xf32, #tpu.memory_space<vmem>>, vector<8x4xf32>
    %cst = arith.constant dense<0.000000e+00> : vector<8x512xf32>
    %5 = tpu.matmul %4, %3, %cst {dimension_numbers = #tpu.dot_dimension_numbers<[1], [0], [0], [1], [0, 0, 1, 1], [], []>} : vector<8x4xf32>, vector<4x512xf32>, vector<8x512xf32> -> vector<8x512xf32>
    %c0_4 = arith.constant 0 : index
    %c0_5 = arith.constant 0 : index
    %c0_6 = arith.constant 0 : index
    %6 = vector.load %arg2[%c0_4, %c0_5, %c0_6] : memref<1x8x1xf32, #tpu.memory_space<vmem>>, vector<1x8x1xf32>
    %7 = vector.shape_cast %6 : vector<1x8x1xf32> to vector<8x1xf32>
    %8 = vector.broadcast %7 : vector<8x1xf32> to vector<8x512xf32>
    %9 = arith.addf %5, %8 : vector<8x512xf32>
    %10 = arith.negf %9 : vector<8x512xf32>
    %11 = math.exp %10 : vector<8x512xf32>
    %cst_7 = arith.constant 1.000000e+00 : f32
    %12 = vector.broadcast %cst_7 : f32 to vector<8x512xf32>
    %13 = arith.addf %12, %11 : vector<8x512xf32>
    %14 = arith.divf %12, %13 : vector<8x512xf32>
    %15 = arith.mulf %9, %14 : vector<8x512xf32>
    %c0_8 = arith.constant 0 : index
    %c0_9 = arith.constant 0 : index
    %16 = vector.load %arg4[%c0_8, %c0_9] : memref<4x8xf32, #tpu.memory_space<vmem>>, vector<4x8xf32>
    %cst_10 = arith.constant dense<0.000000e+00> : vector<4x512xf32>
    %17 = tpu.matmul %16, %15, %cst_10 {dimension_numbers = #tpu.dot_dimension_numbers<[1], [0], [0], [1], [0, 0, 1, 1], [], []>} : vector<4x8xf32>, vector<8x512xf32>, vector<4x512xf32> -> vector<4x512xf32>
    %c0_11 = arith.constant 0 : index
    %c0_12 = arith.constant 0 : index
    %18 = vector.load %arg5[%c0_11, %c0_12] : memref<4x1xf32, #tpu.memory_space<vmem>>, vector<4x1xf32>
    %19 = vector.broadcast %18 : vector<4x1xf32> to vector<4x512xf32>
    %20 = arith.addf %17, %19 : vector<4x512xf32>
    %cst_13 = arith.constant 2.500000e-01 : f32
    %21 = vector.broadcast %cst_13 : f32 to vector<4x512xf32>
    %22 = arith.mulf %21, %20 : vector<4x512xf32>
    %23 = arith.addf %3, %22 : vector<4x512xf32>
    %c0_14 = arith.constant 0 : index
    %c0_15 = arith.constant 0 : index
    %24 = vector.load %arg6[%c0_14, %c0_15] : memref<4x512xf32, #tpu.memory_space<vmem>>, vector<4x512xf32>
    tpu.vector_store %arg6[%c0_14, %c0_15], %23 {strides = array<i32>} : memref<4x512xf32, #tpu.memory_space<vmem>>, vector<4x512xf32>,
    return
  }
  func.func @transform_0(%arg0: i32) -> (i32, i32) {
    %c0_i32 = arith.constant 0 : i32
    %c0_i32_0 = arith.constant 0 : i32
    %c0_i32_1 = arith.constant 0 : i32
    return %c0_i32, %c0_i32_0 : i32, i32
  }
  func.func @transform_1(%arg0: i32) -> (i32, i32, i32) {
    %c0_i32 = arith.constant 0 : i32
    %c0_i32_0 = arith.constant 0 : i32
    %c0_i32_1 = arith.constant 0 : i32
    return %arg0, %c0_i32, %c0_i32_0 : i32, i32, i32
  }
  func.func @transform_2(%arg0: i32) -> (i32, i32) {
    %c0_i32 = arith.constant 0 : i32
    %c0_i32_0 = arith.constant 0 : i32
    %c0_i32_1 = arith.constant 0 : i32
    return %c0_i32, %c0_i32_0 : i32, i32
  }
  func.func @transform_3(%arg0: i32) -> (i32, i32) {
    %c0_i32 = arith.constant 0 : i32
    %c0_i32_0 = arith.constant 0 : i32
    %c0_i32_1 = arith.constant 0 : i32
    return %c0_i32, %c0_i32_0 : i32, i32
  }
  func.func @transform_4(%arg0: i32) -> (i32, i32) {
    %c0_i32 = arith.constant 0 : i32
    %c0_i32_0 = arith.constant 0 : i32
    %c0_i32_1 = arith.constant 0 : i32
    return %c0_i32, %c0_i32_0 : i32, i32
  }
  func.func @transform_5(%arg0: i32) -> (i32, i32) {
    %c0_i32 = arith.constant 0 : i32
    %c0_i32_0 = arith.constant 0 : i32
    %c0_i32_1 = arith.constant 0 : i32
    return %c0_i32, %c0_i32_0 : i32, i32
  }
}

</mosaic_0001>

<llo_original>
// kernel: sde_forward.2
$region0: #{sde_forward.2}
  #allocation0 [shape = 'u32[]', space=smem, size = 0x4, offset = 0x4, fixed_abs, tag = 'smem constant byte address 0x4 - core index']
  #allocation1 [shape = 'u32[72,128]{1,0:T(1,128)}', space=vmem, size = 0x9000, scoped, tag = 'internal scratch']
  %s0 = inlined_call_operand.vmem [shape: f32[4,1], index: 0, kind: input, shape index: {}]
  %s1 = inlined_call_operand.vmem [shape: f32[1,16], index: 1, kind: input, shape index: {}]
  %s2 = inlined_call_operand.vmem [shape: f32[32,32], index: 2, kind: input, shape index: {}]
  %s3 = inlined_call_operand.vmem [shape: f32[1,32], index: 3, kind: input, shape index: {}]
  %s4 = inlined_call_operand.hbm [shape: f32[32,32], index: 4, kind: input, shape index: {}]
  %s5 = inlined_call_operand.vmem [shape: f32[1,32], index: 5, kind: input, shape index: {}]
  %s6 = inlined_call_operand.vmem [shape: f32[32,8], index: 6, kind: input, shape index: {}]
  %s7 = inlined_call_operand.vmem [shape: f32[1,8], index: 7, kind: input, shape index: {}]
  %s8 = inlined_call_operand.vmem [shape: f32[1,8], index: 8, kind: input, shape index: {}]
  %s9 = inlined_call_operand.vmem [shape: f32[4,8], index: 9, kind: output, shape index: {}]
  %s10 = sld [smem:[#allocation0]]
  $region50: #{sde_forward.2} parent=0
    _
  %s12 = ssub.s32 1, %s10
  %s13 = scalar_select 0, %s12, %s10
  $region1: #{sde_forward.2} parent=0
    #allocation2 [shape = 'u8[16384]{0}', space=vmem, size = 0x4000, scoped, tag = 'input window, operand 4, single buffered']
    #allocation3 [shape = 's32[1]{0}', space=sflag, size = 0x4, scoped, tag = 'scoped memory for sde_forward.2']
    %14 = vsyncpa [#allocation3], 0
    // Predicated region
    $region2: #{sde_forward.2} parent=1 // pred_check
      _
    $region3: #{sde_forward.2} parent=1 // pred_check_branch
      %16 = sbr.rel (0) target = $region5
    $region4: #{sde_forward.2} parent=1 // pred_region
      _
    $region5: #{sde_forward.2} parent=1 // pred_fallthru
      _
    // Predicated region
    $region6: #{sde_forward.2} parent=1 // pred_check
      _
    $region7: #{sde_forward.2} parent=1 // pred_check_branch
      %18 = sbr.rel (0) target = $region9
    $region8: #{sde_forward.2} parent=1 // pred_region
      _
    $region9: #{sde_forward.2} parent=1 // pred_fallthru
      _
    // Predicated region
    $region10: #{sde_forward.2} parent=1 // pred_check
      _
    $region11: #{sde_forward.2} parent=1 // pred_check_branch
      %20 = sbr.rel (0) target = $region13
    $region12: #{sde_forward.2} parent=1 // pred_region
      _
    $region13: #{sde_forward.2} parent=1 // pred_fallthru
      _
    // Predicated region
    $region14: #{sde_forward.2} parent=1 // pred_check
      _
    $region15: #{sde_forward.2} parent=1 // pred_check_branch
      %22 = sbr.rel (0) target = $region17
    $region16: #{sde_forward.2} parent=1 // pred_region
      _
    $region17: #{sde_forward.2} parent=1 // pred_fallthru
      _
    // Predicated region
    $region18: #{sde_forward.2} parent=1 // pred_check
      _
    $region19: #{sde_forward.2} parent=1 // pred_check_branch
      %24 = sbr.rel (0) target = $region21
    $region20: #{sde_forward.2} parent=1 // pred_region
      %26 = vsyncadd [#allocation3], 0
      %s27 = sshll.u32 %s4, 4
      %s28 = int_to_ptr.hbm [resolvable:$true] %s27
      %s29 = sshll.u32 [#allocation2], 4
      %s30 = int_to_ptr.vmem [resolvable:$true] %s29
      %35 = dma.hbm_to_vmem [thread:$0]  %s28, 512, %s30, [#allocation3], 128, 128, 8
    $region21: #{sde_forward.2} parent=1 // pred_fallthru
      _
    // Predicated region
    $region22: #{sde_forward.2} parent=1 // pred_check
      _
    $region23: #{sde_forward.2} parent=1 // pred_check_branch
      %37 = sbr.rel (0) target = $region25
    $region24: #{sde_forward.2} parent=1 // pred_region
      _
    $region25: #{sde_forward.2} parent=1 // pred_fallthru
      _
    // Predicated region
    $region26: #{sde_forward.2} parent=1 // pred_check
      _
    $region27: #{sde_forward.2} parent=1 // pred_check_branch
      %39 = sbr.rel (0) target = $region29
    $region28: #{sde_forward.2} parent=1 // pred_region
      _
    $region29: #{sde_forward.2} parent=1 // pred_fallthru
      _
    // Predicated region
    $region30: #{sde_forward.2} parent=1 // pred_check
      _
    $region31: #{sde_forward.2} parent=1 // pred_check_branch
      %41 = sbr.rel (0) target = $region33
    $region32: #{sde_forward.2} parent=1 // pred_region
      _
    $region33: #{sde_forward.2} parent=1 // pred_fallthru
      _
    // Predicated region
    $region34: #{sde_forward.2} parent=1 // pred_check
      _
    $region35: #{sde_forward.2} parent=1 // pred_check_branch
      %43 = sbr.rel (0) target = $region37
    $region36: #{sde_forward.2} parent=1 // pred_region
      _
    $region37: #{sde_forward.2} parent=1 // pred_fallthru
      _
    // Predicated region
    $region38: #{sde_forward.2} parent=1 // pred_check
      _
    $region39: #{sde_forward.2} parent=1 // pred_check_branch
      %45 = sbr.rel (0) target = $region41
    $region40: #{sde_forward.2} parent=1 // pred_region
      %47 = dma.done [#allocation3], 512
    $region41: #{sde_forward.2} parent=1 // pred_fallthru
      _
    %v48 = vld [vmem:[%s0] sm:$0xf]
    %v49 = vmul.f32 %v48, 4.0
    %v50 = vadd.f32 %v49, 1.0
    %v51 = vld [vmem:[%s1] sm:$0x1]
    %53 = vset.pattern.permute.xlu0 0
    %54 = vperm.xlu0 %53, %v50
    %v55 = vpop.permute.xlu0 %54
    %v58 = vperm.slane %v51, 0
    %v60 = vmul.f32 %v55, %v58
    %v61 = vand.u32 2147483647, %v60
    %vm62 = vcmp.le.f32.partialorder %v61, 0.7853982
    %vm63 = vcmp.lt.s32.totalorder %v60, 0
    %v64 = vand.u32 %v60, 2139095040
    %v65 = vshrl.u32 %v64, 23
    %v66 = vsub.s32 %v65, 127
    %v67 = vand.u32 2147483647, %v60
    %v68 = vand.u32 %v67, 8388607
    %v69 = vor.u32 %v68, 8388608
    %v70 = vsub.s32 0, %v69
    %v71 = vadd.s32 %v66, 1
    %vm72 = vcmp.gt.s32.totalorder %v71, 0
    %v73 = vsel %vm72, %v71, 0
    %v74 = vshrl.u32 %v73, 5
    %v75 = vand.u32 %v73, 31
    %v76 = vsub.s32 32, %v75
    %v77 = vshrl.u32 683565275, %v76
    %v78 = vshll.u32 683565275, %v75
    %v79 = vshrl.u32 2475754826, %v76
    %v80 = vor.u32 %v78, %v79
    %v81 = vshll.u32 2475754826, %v75
    %v82 = vshrl.u32 2131351028, %v76
    %v83 = vor.u32 %v81, %v82
    %v84 = vshll.u32 2131351028, %v75
    %v85 = vshrl.u32 2102212464, %v76
    %v86 = vor.u32 %v84, %v85
    %v87 = vshll.u32 2102212464, %v75
    %v88 = vshrl.u32 920167782, %v76
    %v89 = vor.u32 %v87, %v88
    %v90 = vshll.u32 920167782, %v75
    %v91 = vshrl.u32 1326507024, %v76
    %v92 = vor.u32 %v90, %v91
    %vm93 = vcmp.lt.s32.totalorder %v74, 1
    %vm94 = vcmp.lt.s32.totalorder %v74, 2
    %vm95 = vcmp.lt.s32.totalorder %v74, 3
    %vm96 = vcmp.lt.s32.totalorder %v74, 4
    %v97 = vsel %vm93, %v77, %v80
    %v98 = vsel %vm96, %v86, 2102212464
    %v99 = vsel %vm95, %v83, %v98
    %v100 = vsel %vm94, %v97, %v99
    %v101 = vsel %vm93, %v80, %v83
    %v102 = vsel %vm96, %v89, 920167782
    %v103 = vsel %vm95, %v86, %v102
    %v104 = vsel %vm94, %v101, %v103
    %v105 = vsel %vm93, %v83, %v86
    %v106 = vsel %vm96, %v92, 1326507024
    %v107 = vsel %vm95, %v89, %v106
    %v108 = vsel %vm94, %v105, %v107
    %v109 = vshll.u32 %v69, 8
    %v110 = vand.u32 %v109, 65535
    %v111 = vshrl.u32 %v109, 16
    %v112 = vand.u32 %v108, 65535
    %v113 = vshrl.u32 %v108, 16
    %v114 = vmul.u32 %v110, %v112
    %v115 = vmul.u32 %v110, %v113
    %v116 = vmul.u32 %v111, %v112
    %v117 = vmul.u32 %v111, %v113
    %v118 = vshll.u32 %v115, 16
    %v119 = vshrl.u32 %v115, 16
    %v120 = vshll.u32 %v116, 16
    %v121 = vshrl.u32 %v116, 16
    %vm122 = vc.u32 %v114, %v118
    %v123 = vsel %vm122, 1, 0
    %v124 = vadd.s32 %v114, %v118
    %v125 = vadd.s32 %v117, %v123
    %vm126 = vc.u32 %v124, %v120
    %v127 = vsel %vm126, 1, 0
    %v128 = vadd.s32 %v124, %v120
    %v129 = vadd.s32 %v125, %v127
    %v130 = vadd.s32 %v129, %v119
    %v131 = vadd.s32 %v130, %v121
    %v132 = vand.u32 %v109, 65535
    %v133 = vshrl.u32 %v109, 16
    %v134 = vand.u32 %v104, 65535
    %v135 = vshrl.u32 %v104, 16
    %v136 = vmul.u32 %v132, %v134
    %v137 = vmul.u32 %v132, %v135
    %v138 = vmul.u32 %v133, %v134
    %v139 = vmul.u32 %v133, %v135
    %v140 = vshll.u32 %v137, 16
    %v141 = vshrl.u32 %v137, 16
    %v142 = vshll.u32 %v138, 16
    %v143 = vshrl.u32 %v138, 16
    %vm144 = vc.u32 %v136, %v140
    %v145 = vsel %vm144, 1, 0
    %v146 = vadd.s32 %v136, %v140
    %v147 = vadd.s32 %v139, %v145
    %vm148 = vc.u32 %v146, %v142
    %v149 = vsel %vm148, 1, 0
    %v150 = vadd.s32 %v146, %v142
    %v151 = vadd.s32 %v147, %v149
    %v152 = vadd.s32 %v151, %v141
    %v153 = vadd.s32 %v152, %v143
    %v154 = vmul.u32 %v109, %v100
    %v155 = vadd.s32 %v131, %v150
    %vm156 = vc.u32 %v131, %v150
    %v157 = vadd.s32 %v153, 1
    %v158 = vsel %vm156, %v157, %v153
    %v159 = vadd.s32 %v154, %v158
    %v160 = vadd.s32 %v159, 536870912
    %v161 = vshrl.u32 %v160, 30
    %v162 = vshll.u32 %v161, 30
    %v163 = vsub.s32 %v159, %v162
    %vm164 = vcmp.lt.s32.totalorder %v163, 0
    %v165 = vsub.s32 0, %v163
    %v166 = vsel %vm164, %v165, %v163
    %v167 = vclz %v166
    %v168 = vsub.s32 %v167, 2
    %vm169 = vcmp.gt.s32.totalorder 0, %v168
    %v170 = vsel %vm169, 0, %v168
    %v171 = vsub.s32 32, %v170
    %v172 = vshll.u32 %v163, %v170
    %v173 = vshrl.u32 %v155, %v171
    %v174 = vor.u32 %v172, %v173
    %v175 = vsub.s32 4294967266, %v170
    %v176 = vadd.s32 %v175, 127
    %v177 = vshll.u32 %v176, 23
    %v178 = vor.u32 4788187, %v177
    %v179 = vand.u32 2147483647, %v178
    %v181 = vcvt.s32.f32 %v174
    %v182 = vmul.f32 %v181, %v179
    %v183 = vxor.u32 %v182, 2147483648
    %v184 = vsel %vm63, %v183, %v182
    %v185 = vsub.s32 4, %v161
    %v186 = vsel %vm63, %v185, %v161
    %v187 = vsel %vm62, %v60, %v184
    %v188 = vsel %vm62, 0, %v186
    %v189 = vmul.f32 %v187, %v187
    %v190 = vmul.f32 %v189, -0.001358992
    %v191 = vadd.f32 %v190, 0.041655596
    %v192 = vmul.f32 %v189, %v191
    %v193 = vadd.f32 %v192, -0.4999988
    %v194 = vmul.f32 %v189, %v193
    %v195 = vadd.f32 1.0, %v194
    %v196 = vmul.f32 %v187, %v187
    %v197 = vmul.f32 %v196, -0.00019511016
    %v198 = vadd.f32 %v197, 0.008332121
    %v199 = vmul.f32 %v196, %v198
    %v200 = vadd.f32 %v199, -0.16666654
    %v201 = vmul.f32 %v196, %v200
    %v202 = vadd.f32 %v201, 1.0
    %v203 = vmul.f32 %v202, %v187
    %vm204 = vweird.f32 %v60
    %v205 = vadd.s32 %v188, 3
    %v206 = vand.u32 %v205, 3
    %vm207 = vcmp.lt.s32.totalorder %v206, 2
    %vm208 = vcmp.eq.s32.totalorder %v206, 0
    %v209 = vxor.u32 %v203, 2147483648
    %v210 = vsel %vm208, %v195, %v209
    %vm211 = vcmp.eq.s32.totalorder %v206, 2
    %v212 = vxor.u32 %v195, 2147483648
    %v213 = vsel %vm211, %v212, %v203
    %v214 = vsel %vm207, %v210, %v213
    %v215 = vsel %vm204, nan, %v214
    %v216 = vand.u32 2147483647, %v60
    %vm217 = vcmp.le.f32.partialorder %v216, 0.7853982
    %vm218 = vcmp.lt.s32.totalorder %v60, 0
    %v219 = vand.u32 %v60, 2139095040
    %v220 = vshrl.u32 %v219, 23
    %v221 = vsub.s32 %v220, 127
    %v222 = vand.u32 2147483647, %v60
    %v223 = vand.u32 %v222, 8388607
    %v224 = vor.u32 %v223, 8388608
    %v225 = vsub.s32 0, %v224
    %v226 = vadd.s32 %v221, 1
    %vm227 = vcmp.gt.s32.totalorder %v226, 0
    %v228 = vsel %vm227, %v226, 0
    %v229 = vshrl.u32 %v228, 5
    %v230 = vand.u32 %v228, 31
    %v231 = vsub.s32 32, %v230
    %v232 = vshrl.u32 683565275, %v231
    %v233 = vshll.u32 683565275, %v230
    %v234 = vshrl.u32 2475754826, %v231
    %v235 = vor.u32 %v233, %v234
    %v236 = vshll.u32 2475754826, %v230
    %v237 = vshrl.u32 2131351028, %v231
    %v238 = vor.u32 %v236, %v237
    %v239 = vshll.u32 2131351028, %v230
    %v240 = vshrl.u32 2102212464, %v231
    %v241 = vor.u32 %v239, %v240
    %v242 = vshll.u32 2102212464, %v230
    %v243 = vshrl.u32 920167782, %v231
    %v244 = vor.u32 %v242, %v243
    %v245 = vshll.u32 920167782, %v230
    %v246 = vshrl.u32 1326507024, %v231
    %v247 = vor.u32 %v245, %v246
    %vm248 = vcmp.lt.s32.totalorder %v229, 1
    %vm249 = vcmp.lt.s32.totalorder %v229, 2
    %vm250 = vcmp.lt.s32.totalorder %v229, 3
    %vm251 = vcmp.lt.s32.totalorder %v229, 4
    %v252 = vsel %vm248, %v232, %v235
    %v253 = vsel %vm251, %v241, 2102212464
    %v254 = vsel %vm250, %v238, %v253
    %v255 = vsel %vm249, %v252, %v254
    %v256 = vsel %vm248, %v235, %v238
    %v257 = vsel %vm251, %v244, 920167782
    %v258 = vsel %vm250, %v241, %v257
    %v259 = vsel %vm249, %v256, %v258
    %v260 = vsel %vm248, %v238, %v241
    %v261 = vsel %vm251, %v247, 1326507024
    %v262 = vsel %vm250, %v244, %v261
    %v263 = vsel %vm249, %v260, %v262
    %v264 = vshll.u32 %v224, 8
    %v265 = vand.u32 %v264, 65535
    %v266 = vshrl.u32 %v264, 16
    %v267 = vand.u32 %v263, 65535
    %v268 = vshrl.u32 %v263, 16
    %v269 = vmul.u32 %v265, %v267
    %v270 = vmul.u32 %v265, %v268
    %v271 = vmul.u32 %v266, %v267
    %v272 = vmul.u32 %v266, %v268
    %v273 = vshll.u32 %v270, 16
    %v274 = vshrl.u32 %v270, 16
    %v275 = vshll.u32 %v271, 16
    %v276 = vshrl.u32 %v271, 16
    %vm277 = vc.u32 %v269, %v273
    %v278 = vsel %vm277, 1, 0
    %v279 = vadd.s32 %v269, %v273
    %v280 = vadd.s32 %v272, %v278
    %vm281 = vc.u32 %v279, %v275
    %v282 = vsel %vm281, 1, 0
    %v283 = vadd.s32 %v279, %v275
    %v284 = vadd.s32 %v280, %v282
    %v285 = vadd.s32 %v284, %v274
    %v286 = vadd.s32 %v285, %v276
    %v287 = vand.u32 %v264, 65535
    %v288 = vshrl.u32 %v264, 16
    %v289 = vand.u32 %v259, 65535
    %v290 = vshrl.u32 %v259, 16
    %v291 = vmul.u32 %v287, %v289
    %v292 = vmul.u32 %v287, %v290
    %v293 = vmul.u32 %v288, %v289
    %v294 = vmul.u32 %v288, %v290
    %v295 = vshll.u32 %v292, 16
    %v296 = vshrl.u32 %v292, 16
    %v297 = vshll.u32 %v293, 16
    %v298 = vshrl.u32 %v293, 16
    %vm299 = vc.u32 %v291, %v295
    %v300 = vsel %vm299, 1, 0
    %v301 = vadd.s32 %v291, %v295
    %v302 = vadd.s32 %v294, %v300
    %vm303 = vc.u32 %v301, %v297
    %v304 = vsel %vm303, 1, 0
    %v305 = vadd.s32 %v301, %v297
    %v306 = vadd.s32 %v302, %v304
    %v307 = vadd.s32 %v306, %v296
    %v308 = vadd.s32 %v307, %v298
    %v309 = vmul.u32 %v264, %v255
    %v310 = vadd.s32 %v286, %v305
    %vm311 = vc.u32 %v286, %v305
    %v312 = vadd.s32 %v308, 1
    %v313 = vsel %vm311, %v312, %v308
    %v314 = vadd.s32 %v309, %v313
    %v315 = vadd.s32 %v314, 536870912
    %v316 = vshrl.u32 %v315, 30
    %v317 = vshll.u32 %v316, 30
    %v318 = vsub.s32 %v314, %v317
    %vm319 = vcmp.lt.s32.totalorder %v318, 0
    %v320 = vsub.s32 0, %v318
    %v321 = vsel %vm319, %v320, %v318
    %v322 = vclz %v321
    %v323 = vsub.s32 %v322, 2
    %vm324 = vcmp.gt.s32.totalorder 0, %v323
    %v325 = vsel %vm324, 0, %v323
    %v326 = vsub.s32 32, %v325
    %v327 = vshll.u32 %v318, %v325
    %v328 = vshrl.u32 %v310, %v326
    %v329 = vor.u32 %v327, %v328
    %v330 = vsub.s32 4294967266, %v325
    %v331 = vadd.s32 %v330, 127
    %v332 = vshll.u32 %v331, 23
    %v333 = vor.u32 4788187, %v332
    %v334 = vand.u32 2147483647, %v333
    %v336 = vcvt.s32.f32 %v329
    %v337 = vmul.f32 %v336, %v334
    %v338 = vxor.u32 %v337, 2147483648
    %v339 = vsel %vm218, %v338, %v337
    %v340 = vsub.s32 4, %v316
    %v341 = vsel %vm218, %v340, %v316
    %v342 = vsel %vm217, %v60, %v339
    %v343 = vsel %vm217, 0, %v341
    %v344 = vmul.f32 %v342, %v342
    %v345 = vmul.f32 %v344, -0.001358992
    %v346 = vadd.f32 %v345, 0.041655596
    %v347 = vmul.f32 %v344, %v346
    %v348 = vadd.f32 %v347, -0.4999988
    %v349 = vmul.f32 %v344, %v348
    %v350 = vadd.f32 1.0, %v349
    %v351 = vmul.f32 %v342, %v342
    %v352 = vmul.f32 %v351, -0.00019511016
    %v353 = vadd.f32 %v352, 0.008332121
    %v354 = vmul.f32 %v351, %v353
    %v355 = vadd.f32 %v354, -0.16666654
    %v356 = vmul.f32 %v351, %v355
    %v357 = vadd.f32 %v356, 1.0
    %v358 = vmul.f32 %v357, %v342
    %vm359 = vweird.f32 %v60
    %v360 = vand.u32 %v343, 3
    %vm361 = vcmp.lt.s32.totalorder %v360, 2
    %vm362 = vcmp.eq.s32.totalorder %v360, 0
    %v363 = vxor.u32 %v358, 2147483648
    %v364 = vsel %vm362, %v350, %v363
    %vm365 = vcmp.eq.s32.totalorder %v360, 2
    %v366 = vxor.u32 %v350, 2147483648
    %v367 = vsel %vm365, %v366, %v358
    %v368 = vsel %vm361, %v364, %v367
    %v369 = vsel %vm359, nan, %v368
    %371 = vrot.lane.b32.xlu0 %v369, 16
    %v372 = vpop.permute.xlu0 %371
    %vm374 = vcmask 130048
    %v375 = vsel %vm374, %v215, %v372
    %v376 = vld [vmem:[%s2] sm:$0xff]
    %v377 = vld [vmem:[%s2 + $0x8] sm:$0xff]
    %v378 = vld [vmem:[%s2 + $0x10] sm:$0xff]
    %v379 = vld [vmem:[%s2 + $0x18] sm:$0xff]
    %v380 = vld [vmem:[%s3] sm:$0x1]
    %v382 = vperm.slane %v380, 0
    %vm384 = vcmask 261120
    %v386 = vsel %vm384, %v375, 0
    %388 = vmatpush.msra.mxu0 0.0
    %389 = vmatpush.msra.mxu0 0.0
    %390 = vmatpush.msra.mxu0 0.0
    %391 = vmatpush.msra.mxu0 0.0
    %392 = vmatpush.msra.mxu0 0.0
    %393 = vmatpush.msra.mxu0 0.0
    %394 = vmatpush.msra.mxu0 0.0
    %395 = vmatpush.msra.mxu0 0.0
    %396 = vmatpush.msra.mxu0 0.0
    %397 = vmatpush.msra.mxu0 0.0
    %398 = vmatpush.msra.mxu0 0.0
    %399 = vmatpush.msra.mxu0 0.0
    %400 = vmatpush.msra.mxu0 %v379
    %401 = vmatpush.msra.mxu0 %v378
    %402 = vmatpush.msra.mxu0 %v377
    %403 = vmatpush.msra.mxu0 %v376
    %404 = vmatmul.f32.gmra.mxu0 %v386
    %v405 = vpop.f32.mrf.mxu0
    %v406 = vadd.f32 %v382, %v405
    %407 = vdwg.mxu0
    %v408 = vxor.u32 %v406, 2147483648
    %v409 = vmul.f32 %v408, 1.442695
    %v410 = vpow.pop %v409
    %v411 = vadd.f32 %v410, 1.0
    %v412 = vrcp.pop %v411
    %v413 = vmul.f32 %v411, %v412
    %v414 = vsub.f32 1.0, %v413
    %v415 = vmul.f32 %v412, %v414
    %v416 = vadd.f32 %v412, %v415
    %vm417 = vweird.f32 %v411
    %vm418 = vweird.f32 %v412
    %vm419 = vmor %vm417, %vm418
    %v420 = vsel %vm419, %v412, %v416
    %v421 = vand.u32 2147483647, %v411
    %vm422 = vcmp.eq.f32.partialorder %v421, 8.507059e+37
    %v423 = vand.u32 %v411, 2147483648
    %v424 = vor.u32 1.1754944e-38, %v423
    %v425 = vsel %vm422, %v424, %v420
    %v426 = vmul.f32 1.0, %v425
    %v427 = vmul.f32 %v406, %v426
    %v428 = vld [vmem:[#allocation2] sm:$0xff]
    %v429 = vld [vmem:[#allocation2 + $0x8] sm:$0xff]
    %v430 = vld [vmem:[#allocation2 + $0x10] sm:$0xff]
    %v431 = vld [vmem:[#allocation2 + $0x18] sm:$0xff]
    %v432 = vld [vmem:[%s5] sm:$0x1]
    %v434 = vperm.slane %v432, 0
    %v437 = vsel %vm384, %v427, 0
    %439 = vmatpush.msra.mxu0 0.0
    %440 = vmatpush.msra.mxu0 0.0
    %441 = vmatpush.msra.mxu0 0.0
    %442 = vmatpush.msra.mxu0 0.0
    %443 = vmatpush.msra.mxu0 0.0
    %444 = vmatpush.msra.mxu0 0.0
    %445 = vmatpush.msra.mxu0 0.0
    %446 = vmatpush.msra.mxu0 0.0
    %447 = vmatpush.msra.mxu0 0.0
    %448 = vmatpush.msra.mxu0 0.0
    %449 = vmatpush.msra.mxu0 0.0
    %450 = vmatpush.msra.mxu0 0.0
    %451 = vmatpush.msra.mxu0 %v431
    %452 = vmatpush.msra.mxu0 %v430
    %453 = vmatpush.msra.mxu0 %v429
    %454 = vmatpush.msra.mxu0 %v428
    %455 = vmatmul.f32.gmra.mxu0 %v437
    %v456 = vpop.f32.mrf.mxu0
    %v457 = vadd.f32 %v434, %v456
    %458 = vdwg.mxu0
    %v459 = vld [vmem:[%s6] sm:$0xff]
    %v460 = vld [vmem:[%s6 + $0x8] sm:$0xff]
    %v461 = vld [vmem:[%s6 + $0x10] sm:$0xff]
    %v462 = vld [vmem:[%s6 + $0x18] sm:$0xff]
    %v463 = vld [vmem:[%s7] sm:$0x1]
    %v465 = vperm.slane %v463, 0
    %v468 = vsel %vm384, %v457, 0
    %470 = vmatpush.msra.mxu0 0.0
    %471 = vmatpush.msra.mxu0 0.0
    %472 = vmatpush.msra.mxu0 0.0
    %473 = vmatpush.msra.mxu0 0.0
    %474 = vmatpush.msra.mxu0 0.0
    %475 = vmatpush.msra.mxu0 0.0
    %476 = vmatpush.msra.mxu0 0.0
    %477 = vmatpush.msra.mxu0 0.0
    %478 = vmatpush.msra.mxu0 0.0
    %479 = vmatpush.msra.mxu0 0.0
    %480 = vmatpush.msra.mxu0 0.0
    %481 = vmatpush.msra.mxu0 0.0
    %482 = vmatpush.msra.mxu0 %v462
    %483 = vmatpush.msra.mxu0 %v461
    %484 = vmatpush.msra.mxu0 %v460
    %485 = vmatpush.msra.mxu0 %v459
    %486 = vmatmul.f32.gmra.mxu0 %v468
    %v487 = vpop.f32.mrf.mxu0
    %v488 = vadd.f32 %v465, %v487
    %489 = vdwg.mxu0
    %v490 = vld [vmem:[%s8] sm:$0x1]
    %v492 = vperm.slane %v490, 0
    %v494 = vadd.f32 %v488, %v492
    %vm495 = vcmask 60416
    %496 = vst.msk [vmem:[%s9] sm:$0xf] %vm495, %v494
    // Predicated region
    $region42: #{sde_forward.2} parent=1 // pred_check
      _
    $region43: #{sde_forward.2} parent=1 // pred_check_branch
      %498 = sbr.rel (0) target = $region45
    $region44: #{sde_forward.2} parent=1 // pred_region
      _
    $region45: #{sde_forward.2} parent=1 // pred_fallthru
      _
    // Predicated region
    $region46: #{sde_forward.2} parent=1 // pred_check
      _
    $region47: #{sde_forward.2} parent=1 // pred_check_branch
      %500 = sbr.rel (0) target = $region49
    $region48: #{sde_forward.2} parent=1 // pred_region
      _
    $region49: #{sde_forward.2} parent=1 // pred_fallthru
      _
    %501 = vsyncpa [#allocation3], 1

// kernel: sde_forward.3
$region0: #{sde_forward.3}
  #allocation0 [shape = 'u32[]', space=smem, size = 0x4, offset = 0x4, fixed_abs, tag = 'smem constant byte address 0x4 - core index']
  #allocation1 [shape = 'u32[72,128]{1,0:T(1,128)}', space=vmem, size = 0x9000, scoped, tag = 'internal scratch']
  %s0 = inlined_call_operand.vmem [shape: f32[4,512], index: 0, kind: input, shape index: {}]
  %s1 = inlined_call_operand.vmem [shape: f32[4,8,1], index: 1, kind: input, shape index: {}]
  %s2 = inlined_call_operand.vmem [shape: f32[8,4], index: 2, kind: input, shape index: {}]
  %s3 = inlined_call_operand.vmem [shape: f32[4,8], index: 3, kind: input, shape index: {}]
  %s4 = inlined_call_operand.vmem [shape: f32[4,1], index: 4, kind: input, shape index: {}]
  %s5 = inlined_call_operand.vmem [shape: f32[4,512], index: 5, kind: output, shape index: {}]
  %s6 = sld [smem:[#allocation0]]
  $region57: #{sde_forward.3} parent=0
    _
  %s8 = ssub.s32 1, %s6
  %s9 = scalar_select 0, %s8, %s6
  loop: start=0, step=1, limit=6
  $region2: #{sde_forward.3} parent=0 // loop_pre_header
    _
  $region3: #{sde_forward.3} parent=0 // loop_header
    %s11 = sphi 0, %s15
    %p12 = scmp.ge.s32.totalorder %s11, 6
    %s19 = sphi 0, %s19
    %s21 = sphi 0, %s19
    %s22 = sphi 0, %s21
    %s36 = sphi 0, %s22
    %s42 = sphi 0, %s44
    %s45 = sphi 0, %s42
    %s46 = sphi 0, %s45
    %s62 = sphi 0, %s46
    %s66 = sphi 0, %s66
    %s68 = sphi 0, %s66
    %s69 = sphi 0, %s68
    %s83 = sphi 0, %s69
    %s87 = sphi 0, %s87
    %s89 = sphi 0, %s87
    %s90 = sphi 0, %s89
    %s104 = sphi 0, %s90
    %s108 = sphi 0, %s108
    %s110 = sphi 0, %s108
    %s111 = sphi 0, %s110
    %s125 = sphi 0, %s111
    %s129 = sphi 0, %s129
    %s131 = sphi 0, %s129
    %s132 = sphi 0, %s131
    %s146 = sphi 0, %s132
  $region4: #{sde_forward.3} parent=0 // loop_header_branch
    %14 = sbr.rel (%p12) target = $region8
  $region5: #{sde_forward.3} parent=0 // loop_body
    %s16 = ssub.s32 %s11, 1
    %s17 = ssub.s32 %s11, 2
    %s18 = sadd.s32 %s11, 1
    %s20 = sadd.s32 %s19, 1
    %p23 = scmp.eq.s32.totalorder %s11, 3
    %p24 = scmp.ne.s32.totalorder %s19, %s21
    %p25 = scmp.eq.s32.totalorder %s11, 0
    %p26 = por %p24, %p25
    %p27 = scmp.ne.s32.totalorder %s19, %s21
    %p28 = scmp.eq.s32.totalorder %s16, 3
    %p29 = por %p27, %p28
    %p30 = scmp.ne.s32.totalorder %s21, %s22
    %p31 = scmp.eq.s32.totalorder %s16, 0
    %p32 = por %p30, %p31
    %p33 = scmp.ne.s32.totalorder %s21, %s22
    %p34 = scmp.eq.s32.totalorder %s17, 3
    %p35 = por %p33, %p34
    %p37 = scmp.ne.s32.totalorder %s22, %s36
    %p38 = scmp.eq.s32.totalorder %s17, 0
    %p39 = por %p37, %p38
    %s40 = ssub.s32 %s11, %s18
    %p41 = scmp.eq.s32.totalorder %s40, 0
    %s43 = sadd.s32 %s42, 1
    %s44 = scalar_select %p41, %s42, %s43
    %p47 = pneg %p41
    %p48 = scmp.eq.s32.totalorder %s11, 3
    %p49 = por %p47, %p48
    %p50 = scmp.ne.s32.totalorder %s42, %s45
    %p51 = scmp.eq.s32.totalorder %s11, 0
    %p52 = por %p50, %p51
    %p53 = scmp.ne.s32.totalorder %s42, %s45
    %p54 = scmp.eq.s32.totalorder %s16, 3
    %p55 = por %p53, %p54
    %p56 = scmp.ne.s32.totalorder %s45, %s46
    %p57 = scmp.eq.s32.totalorder %s16, 0
    %p58 = por %p56, %p57
    %p59 = scmp.ne.s32.totalorder %s45, %s46
    %p60 = scmp.eq.s32.totalorder %s17, 3
    %p61 = por %p59, %p60
    %p63 = scmp.ne.s32.totalorder %s46, %s62
    %p64 = scmp.eq.s32.totalorder %s17, 0
    %p65 = por %p63, %p64
    %s67 = sadd.s32 %s66, 1
    %p70 = scmp.eq.s32.totalorder %s11, 3
    %p71 = scmp.ne.s32.totalorder %s66, %s68
    %p72 = scmp.eq.s32.totalorder %s11, 0
    %p73 = por %p71, %p72
    %p74 = scmp.ne.s32.totalorder %s66, %s68
    %p75 = scmp.eq.s32.totalorder %s16, 3
    %p76 = por %p74, %p75
    %p77 = scmp.ne.s32.totalorder %s68, %s69
    %p78 = scmp.eq.s32.totalorder %s16, 0
    %p79 = por %p77, %p78
    %p80 = scmp.ne.s32.totalorder %s68, %s69
    %p81 = scmp.eq.s32.totalorder %s17, 3
    %p82 = por %p80, %p81
    %p84 = scmp.ne.s32.totalorder %s69, %s83
    %p85 = scmp.eq.s32.totalorder %s17, 0
    %p86 = por %p84, %p85
    %s88 = sadd.s32 %s87, 1
    %p91 = scmp.eq.s32.totalorder %s11, 3
    %p92 = scmp.ne.s32.totalorder %s87, %s89
    %p93 = scmp.eq.s32.totalorder %s11, 0
    %p94 = por %p92, %p93
    %p95 = scmp.ne.s32.totalorder %s87, %s89
    %p96 = scmp.eq.s32.totalorder %s16, 3
    %p97 = por %p95, %p96
    %p98 = scmp.ne.s32.totalorder %s89, %s90
    %p99 = scmp.eq.s32.totalorder %s16, 0
    %p100 = por %p98, %p99
    %p101 = scmp.ne.s32.totalorder %s89, %s90
    %p102 = scmp.eq.s32.totalorder %s17, 3
    %p103 = por %p101, %p102
    %p105 = scmp.ne.s32.totalorder %s90, %s104
    %p106 = scmp.eq.s32.totalorder %s17, 0
    %p107 = por %p105, %p106
    %s109 = sadd.s32 %s108, 1
    %p112 = scmp.eq.s32.totalorder %s11, 3
    %p113 = scmp.ne.s32.totalorder %s108, %s110
    %p114 = scmp.eq.s32.totalorder %s11, 0
    %p115 = por %p113, %p114
    %p116 = scmp.ne.s32.totalorder %s108, %s110
    %p117 = scmp.eq.s32.totalorder %s16, 3
    %p118 = por %p116, %p117
    %p119 = scmp.ne.s32.totalorder %s110, %s111
    %p120 = scmp.eq.s32.totalorder %s16, 0
    %p121 = por %p119, %p120
    %p122 = scmp.ne.s32.totalorder %s110, %s111
    %p123 = scmp.eq.s32.totalorder %s17, 3
    %p124 = por %p122, %p123
    %p126 = scmp.ne.s32.totalorder %s111, %s125
    %p127 = scmp.eq.s32.totalorder %s17, 0
    %p128 = por %p126, %p127
    %s130 = sadd.s32 %s129, 1
    %p133 = scmp.eq.s32.totalorder %s11, 3
    %p134 = scmp.ne.s32.totalorder %s129, %s131
    %p135 = scmp.eq.s32.totalorder %s11, 0
    %p136 = por %p134, %p135
    %p137 = scmp.ne.s32.totalorder %s129, %s131
    %p138 = scmp.eq.s32.totalorder %s16, 3
    %p139 = por %p137, %p138
    %p140 = scmp.ne.s32.totalorder %s131, %s132
    %p141 = scmp.eq.s32.totalorder %s16, 0
    %p142 = por %p140, %p141
    %p143 = scmp.ne.s32.totalorder %s131, %s132
    %p144 = scmp.eq.s32.totalorder %s17, 3
    %p145 = por %p143, %p144
    %p147 = scmp.ne.s32.totalorder %s132, %s146
    %p148 = scmp.eq.s32.totalorder %s17, 0
    %p149 = por %p147, %p148
    %p150 = scmp.le.s32.totalorder 1, %s11
    %p151 = scmp.lt.s32.totalorder %s11, 5
    %p152 = pnand %p150, %p151
    %p153 = pneg %p152
    // Predicated region
    $region9: #{sde_forward.3} parent=5 // pred_check
      _
    $region10: #{sde_forward.3} parent=5 // pred_check_branch
      %155 = sbr.rel (%p152) target = $region12
    $region11: #{sde_forward.3} parent=5 // pred_region
      %s156 = ssub.s32 %s11, 1
      // Predicated region
      $region13: #{sde_forward.3} parent=11 // pred_check
        %p157 = pneg %p32
      $region14: #{sde_forward.3} parent=11 // pred_check_branch
        %159 = sbr.rel (%p157) target = $region16
      $region15: #{sde_forward.3} parent=11 // pred_region
        _
      $region16: #{sde_forward.3} parent=11 // pred_fallthru
        _
      // Predicated region
      $region17: #{sde_forward.3} parent=11 // pred_check
        %p160 = pneg %p79
      $region18: #{sde_forward.3} parent=11 // pred_check_branch
        %162 = sbr.rel (%p160) target = $region20
      $region19: #{sde_forward.3} parent=11 // pred_region
        _
      $region20: #{sde_forward.3} parent=11 // pred_fallthru
        _
      // Predicated region
      $region21: #{sde_forward.3} parent=11 // pred_check
        %p163 = pneg %p100
      $region22: #{sde_forward.3} parent=11 // pred_check_branch
        %165 = sbr.rel (%p163) target = $region24
      $region23: #{sde_forward.3} parent=11 // pred_region
        _
      $region24: #{sde_forward.3} parent=11 // pred_fallthru
        _
      // Predicated region
      $region25: #{sde_forward.3} parent=11 // pred_check
        %p166 = pneg %p121
      $region26: #{sde_forward.3} parent=11 // pred_check_branch
        %168 = sbr.rel (%p166) target = $region28
      $region27: #{sde_forward.3} parent=11 // pred_region
        _
      $region28: #{sde_forward.3} parent=11 // pred_fallthru
        _
    $region12: #{sde_forward.3} parent=5 // pred_fallthru
      _
    %p169 = scmp.lt.s32.totalorder %s11, 4
    // Predicated region
    $region29: #{sde_forward.3} parent=5 // pred_check
      %p170 = pneg %p169
    $region30: #{sde_forward.3} parent=5 // pred_check_branch
      %172 = sbr.rel (%p170) target = $region32
    $region31: #{sde_forward.3} parent=5 // pred_region
      // Predicated region
      $region33: #{sde_forward.3} parent=31 // pred_check
        %p173 = pneg %p52
      $region34: #{sde_forward.3} parent=31 // pred_check_branch
        %175 = sbr.rel (%p173) target = $region36
      $region35: #{sde_forward.3} parent=31 // pred_region
        %p176 = scmp.lt.s32.totalorder %s11, 3
        %s177 = scalar_select %p176, %s11, 3
        %s178 = smul.addr %s177, 8
        %s179 = scalar_lea.vmem %s1, %s178
      $region36: #{sde_forward.3} parent=31 // pred_fallthru
        _
    $region32: #{sde_forward.3} parent=5 // pred_fallthru
      _
    %p180 = scmp.le.s32.totalorder 1, %s11
    %p181 = scmp.lt.s32.totalorder %s11, 5
    %p182 = pnand %p180, %p181
    %p183 = pneg %p182
    // Predicated region
    $region37: #{sde_forward.3} parent=5 // pred_check
      _
    $region38: #{sde_forward.3} parent=5 // pred_check_branch
      %185 = sbr.rel (%p182) target = $region40
    $region39: #{sde_forward.3} parent=5 // pred_region
      %s186 = ssub.s32 %s11, 1
      %p187 = pneg %p32
      %p188 = pneg %p29
      %p189 = scmp.lt.s32.totalorder %s16, 3
      %s190 = scalar_select %p189, %s16, 3
      %s191 = smul.addr %s190, 8
      %s192 = scalar_lea.vmem %s1, %s191
      %p193 = pneg %p58
      %p194 = pneg %p55
      %p195 = pneg %p79
      %p196 = pneg %p76
      %p197 = pneg %p100
      %p198 = pneg %p97
      %p199 = pneg %p121
      %p200 = pneg %p118
      %p201 = pneg %p142
      %p202 = pneg %p139
      %p203 = scmp.lt.s32.totalorder %s16, 3
      %s204 = scalar_select %p203, %s16, 3
      %s205 = smul.addr %s204, 8
      %s206 = scalar_lea.vmem %s1, %s205
      %p207 = scmp.eq.s32.totalorder %s16, 0
      // Predicated region
      $region41: #{sde_forward.3} parent=39 // pred_check
        %p208 = pneg %p207
      $region42: #{sde_forward.3} parent=39 // pred_check_branch
        %210 = sbr.rel (%p208) target = $region44
      $region43: #{sde_forward.3} parent=39 // pred_region
        %v211 = vld [vmem:[%s0] sm:$0xff]
        %v212 = vld [vmem:[%s0 + $0x8] sm:$0xff]
        %213 = vst [vmem:[%s5] sm:$0xff] %v211
        %214 = vst [vmem:[%s5 + $0x8] sm:$0xff] %v212
      $region44: #{sde_forward.3} parent=39 // pred_fallthru
        _
      %v215 = vld [vmem:[%s5] sm:$0xff]
      %v216 = vld [vmem:[%s5 + $0x8] sm:$0xff]
      %v217 = vld [vmem:[%s2] sm:$0xff]
      %v218 = vld [vmem:[%s206] sm:$0xff]
      %220 = vset.pattern.permute.xlu0 0
      %221 = vperm.xlu0 %220, %v218
      %v222 = vpop.permute.xlu0 %221
      %226 = vst [vmem:[#allocation1] ss:$2 sm:$0xff] %v215
      %s227 = scalar_lea.vmem [#allocation1], 16
      %228 = vst [vmem:[%s227] ss:$2 sm:$0xff] %v216
      %v229 = vld.sshfl [vmem:[#allocation1] sm:$0xff pattern:$0x75316420]
      %v230 = vld.sshfl [vmem:[#allocation1 + $0x8] sm:$0xff pattern:$0x75316420]
      %v231 = vld.sshfl [vmem:[#allocation1 + $0x10] sm:$0xff pattern:$0x75316420]
      %v232 = vld.sshfl [vmem:[#allocation1 + $0x18] sm:$0xff pattern:$0x75316420]
      %vm233 = vcmask 31744
      %v235 = vsel %vm233, %v217, 0
      %vm237 = vcmask 1043456
      %v238 = vsel %vm237, %v229, 0
      %v240 = vsel %vm237, %v230, 0
      %v242 = vsel %vm237, %v231, 0
      %v244 = vsel %vm237, %v232, 0
      %246 = vmatpush.msra.mxu0 0.0
      %247 = vmatpush.msra.mxu0 0.0
      %248 = vmatpush.msra.mxu0 0.0
      %249 = vmatpush.msra.mxu0 0.0
      %250 = vmatpush.msra.mxu0 0.0
      %251 = vmatpush.msra.mxu0 0.0
      %252 = vmatpush.msra.mxu0 0.0
      %253 = vmatpush.msra.mxu0 0.0
      %254 = vmatpush.msra.mxu0 0.0
      %255 = vmatpush.msra.mxu0 0.0
      %256 = vmatpush.msra.mxu0 0.0
      %257 = vmatpush.msra.mxu0 0.0
      %258 = vmatpush.msra.mxu0 0.0
      %259 = vmatpush.msra.mxu0 0.0
      %260 = vmatpush.msra.mxu0 0.0
      %261 = vmatpush.msra.mxu0 %v238
      %262 = vmatmul.f32.gmra.mxu0 %v235
      %v263 = vpop.f32.mrf.mxu0
      %v264 = vadd.f32 %v222, %v263
      %265 = vdwg.mxu0
      %266 = vmatpush.msra.mxu0 0.0
      %267 = vmatpush.msra.mxu0 0.0
      %268 = vmatpush.msra.mxu0 0.0
      %269 = vmatpush.msra.mxu0 0.0
      %270 = vmatpush.msra.mxu0 0.0
      %271 = vmatpush.msra.mxu0 0.0
      %272 = vmatpush.msra.mxu0 0.0
      %273 = vmatpush.msra.mxu0 0.0
      %274 = vmatpush.msra.mxu0 0.0
      %275 = vmatpush.msra.mxu0 0.0
      %276 = vmatpush.msra.mxu0 0.0
      %277 = vmatpush.msra.mxu0 0.0
      %278 = vmatpush.msra.mxu0 0.0
      %279 = vmatpush.msra.mxu0 0.0
      %280 = vmatpush.msra.mxu0 0.0
      %281 = vmatpush.msra.mxu0 %v240
      %282 = vmatmul.f32.gmra.mxu0 %v235
      %v283 = vpop.f32.mrf.mxu0
      %v284 = vadd.f32 %v222, %v283
      %285 = vdwg.mxu0
      %286 = vmatpush.msra.mxu0 0.0
      %287 = vmatpush.msra.mxu0 0.0
      %288 = vmatpush.msra.mxu0 0.0
      %289 = vmatpush.msra.mxu0 0.0
      %290 = vmatpush.msra.mxu0 0.0
      %291 = vmatpush.msra.mxu0 0.0
      %292 = vmatpush.msra.mxu0 0.0
      %293 = vmatpush.msra.mxu0 0.0
      %294 = vmatpush.msra.mxu0 0.0
      %295 = vmatpush.msra.mxu0 0.0
      %296 = vmatpush.msra.mxu0 0.0
      %297 = vmatpush.msra.mxu0 0.0
      %298 = vmatpush.msra.mxu0 0.0
      %299 = vmatpush.msra.mxu0 0.0
      %300 = vmatpush.msra.mxu0 0.0
      %301 = vmatpush.msra.mxu0 %v242
      %302 = vmatmul.f32.gmra.mxu0 %v235
      %v303 = vpop.f32.mrf.mxu0
      %v304 = vadd.f32 %v222, %v303
      %305 = vdwg.mxu0
      %306 = vmatpush.msra.mxu0 0.0
      %307 = vmatpush.msra.mxu0 0.0
      %308 = vmatpush.msra.mxu0 0.0
      %309 = vmatpush.msra.mxu0 0.0
      %310 = vmatpush.msra.mxu0 0.0
      %311 = vmatpush.msra.mxu0 0.0
      %312 = vmatpush.msra.mxu0 0.0
      %313 = vmatpush.msra.mxu0 0.0
      %314 = vmatpush.msra.mxu0 0.0
      %315 = vmatpush.msra.mxu0 0.0
      %316 = vmatpush.msra.mxu0 0.0
      %317 = vmatpush.msra.mxu0 0.0
      %318 = vmatpush.msra.mxu0 0.0
      %319 = vmatpush.msra.mxu0 0.0
      %320 = vmatpush.msra.mxu0 0.0
      %321 = vmatpush.msra.mxu0 %v244
      %322 = vmatmul.f32.gmra.mxu0 %v235
      %v323 = vpop.f32.mrf.mxu0
      %v324 = vadd.f32 %v222, %v323
      %325 = vdwg.mxu0
      %v326 = vxor.u32 %v264, 2147483648
      %v327 = vxor.u32 %v284, 2147483648
      %v328 = vxor.u32 %v304, 2147483648
      %v329 = vxor.u32 %v324, 2147483648
      %v330 = vmul.f32 %v326, 1.442695
      %v331 = vpow.pop %v330
      %v332 = vmul.f32 %v327, 1.442695
      %v333 = vpow.pop %v332
      %v334 = vmul.f32 %v328, 1.442695
      %v335 = vpow.pop %v334
      %v336 = vmul.f32 %v329, 1.442695
      %v337 = vpow.pop %v336
      %v338 = vadd.f32 %v331, 1.0
      %v339 = vadd.f32 %v333, 1.0
      %v340 = vadd.f32 %v335, 1.0
      %v341 = vadd.f32 %v337, 1.0
      %v342 = vrcp.pop %v338
      %v343 = vmul.f32 %v338, %v342
      %v344 = vsub.f32 1.0, %v343
      %v345 = vmul.f32 %v342, %v344
      %v346 = vadd.f32 %v342, %v345
      %vm347 = vweird.f32 %v338
      %vm348 = vweird.f32 %v342
      %vm349 = vmor %vm347, %vm348
      %v350 = vsel %vm349, %v342, %v346
      %v351 = vand.u32 2147483647, %v338
      %vm352 = vcmp.eq.f32.partialorder %v351, 8.507059e+37
      %v353 = vand.u32 %v338, 2147483648
      %v354 = vor.u32 1.1754944e-38, %v353
      %v355 = vsel %vm352, %v354, %v350
      %v356 = vmul.f32 1.0, %v355
      %v357 = vrcp.pop %v339
      %v358 = vmul.f32 %v339, %v357
      %v359 = vsub.f32 1.0, %v358
      %v360 = vmul.f32 %v357, %v359
      %v361 = vadd.f32 %v357, %v360
      %vm362 = vweird.f32 %v339
      %vm363 = vweird.f32 %v357
      %vm364 = vmor %vm362, %vm363
      %v365 = vsel %vm364, %v357, %v361
      %v366 = vand.u32 2147483647, %v339
      %vm367 = vcmp.eq.f32.partialorder %v366, 8.507059e+37
      %v368 = vand.u32 %v339, 2147483648
      %v369 = vor.u32 1.1754944e-38, %v368
      %v370 = vsel %vm367, %v369, %v365
      %v371 = vmul.f32 1.0, %v370
      %v372 = vrcp.pop %v340
      %v373 = vmul.f32 %v340, %v372
      %v374 = vsub.f32 1.0, %v373
      %v375 = vmul.f32 %v372, %v374
      %v376 = vadd.f32 %v372, %v375
      %vm377 = vweird.f32 %v340
      %vm378 = vweird.f32 %v372
      %vm379 = vmor %vm377, %vm378
      %v380 = vsel %vm379, %v372, %v376
      %v381 = vand.u32 2147483647, %v340
      %vm382 = vcmp.eq.f32.partialorder %v381, 8.507059e+37
      %v383 = vand.u32 %v340, 2147483648
      %v384 = vor.u32 1.1754944e-38, %v383
      %v385 = vsel %vm382, %v384, %v380
      %v386 = vmul.f32 1.0, %v385
      %v387 = vrcp.pop %v341
      %v388 = vmul.f32 %v341, %v387
      %v389 = vsub.f32 1.0, %v388
      %v390 = vmul.f32 %v387, %v389
      %v391 = vadd.f32 %v387, %v390
      %vm392 = vweird.f32 %v341
      %vm393 = vweird.f32 %v387
      %vm394 = vmor %vm392, %vm393
      %v395 = vsel %vm394, %v387, %v391
      %v396 = vand.u32 2147483647, %v341
      %vm397 = vcmp.eq.f32.partialorder %v396, 8.507059e+37
      %v398 = vand.u32 %v341, 2147483648
      %v399 = vor.u32 1.1754944e-38, %v398
      %v400 = vsel %vm397, %v399, %v395
      %v401 = vmul.f32 1.0, %v400
      %v402 = vmul.f32 %v264, %v356
      %v403 = vmul.f32 %v284, %v371
      %v404 = vmul.f32 %v304, %v386
      %v405 = vmul.f32 %v324, %v401
      %v406 = vld [vmem:[%s3] sm:$0xf]
      %v407 = vld [vmem:[%s4] sm:$0xf]
      %409 = vset.pattern.permute.xlu0 0
      %410 = vperm.xlu0 %409, %v407
      %v411 = vpop.permute.xlu0 %410
      %vm413 = vcmask 64512
      %v415 = vsel %vm413, %v406, 0
      %417 = vmatpush.msra.mxu0 0.0
      %418 = vmatpush.msra.mxu0 0.0
      %419 = vmatpush.msra.mxu0 0.0
      %420 = vmatpush.msra.mxu0 0.0
      %421 = vmatpush.msra.mxu0 0.0
      %422 = vmatpush.msra.mxu0 0.0
      %423 = vmatpush.msra.mxu0 0.0
      %424 = vmatpush.msra.mxu0 0.0
      %425 = vmatpush.msra.mxu0 0.0
      %426 = vmatpush.msra.mxu0 0.0
      %427 = vmatpush.msra.mxu0 0.0
      %428 = vmatpush.msra.mxu0 0.0
      %429 = vmatpush.msra.mxu0 0.0
      %430 = vmatpush.msra.mxu0 0.0
      %431 = vmatpush.msra.mxu0 0.0
      %432 = vmatpush.msra.mxu0 %v402
      %433 = vmatmul.f32.gmra.mxu0 %v415
      %v434 = vpop.f32.mrf.mxu0
      %v435 = vadd.f32 %v411, %v434
      %436 = vdwg.mxu0
      %437 = vmatpush.msra.mxu0 0.0
      %438 = vmatpush.msra.mxu0 0.0
      %439 = vmatpush.msra.mxu0 0.0
      %440 = vmatpush.msra.mxu0 0.0
      %441 = vmatpush.msra.mxu0 0.0
      %442 = vmatpush.msra.mxu0 0.0
      %443 = vmatpush.msra.mxu0 0.0
      %444 = vmatpush.msra.mxu0 0.0
      %445 = vmatpush.msra.mxu0 0.0
      %446 = vmatpush.msra.mxu0 0.0
      %447 = vmatpush.msra.mxu0 0.0
      %448 = vmatpush.msra.mxu0 0.0
      %449 = vmatpush.msra.mxu0 0.0
      %450 = vmatpush.msra.mxu0 0.0
      %451 = vmatpush.msra.mxu0 0.0
      %452 = vmatpush.msra.mxu0 %v403
      %453 = vmatmul.f32.gmra.mxu0 %v415
      %v454 = vpop.f32.mrf.mxu0
      %v455 = vadd.f32 %v411, %v454
      %456 = vdwg.mxu0
      %457 = vmatpush.msra.mxu0 0.0
      %458 = vmatpush.msra.mxu0 0.0
      %459 = vmatpush.msra.mxu0 0.0
      %460 = vmatpush.msra.mxu0 0.0
      %461 = vmatpush.msra.mxu0 0.0
      %462 = vmatpush.msra.mxu0 0.0
      %463 = vmatpush.msra.mxu0 0.0
      %464 = vmatpush.msra.mxu0 0.0
      %465 = vmatpush.msra.mxu0 0.0
      %466 = vmatpush.msra.mxu0 0.0
      %467 = vmatpush.msra.mxu0 0.0
      %468 = vmatpush.msra.mxu0 0.0
      %469 = vmatpush.msra.mxu0 0.0
      %470 = vmatpush.msra.mxu0 0.0
      %471 = vmatpush.msra.mxu0 0.0
      %472 = vmatpush.msra.mxu0 %v404
      %473 = vmatmul.f32.gmra.mxu0 %v415
      %v474 = vpop.f32.mrf.mxu0
      %v475 = vadd.f32 %v411, %v474
      %476 = vdwg.mxu0
      %477 = vmatpush.msra.mxu0 0.0
      %478 = vmatpush.msra.mxu0 0.0
      %479 = vmatpush.msra.mxu0 0.0
      %480 = vmatpush.msra.mxu0 0.0
      %481 = vmatpush.msra.mxu0 0.0
      %482 = vmatpush.msra.mxu0 0.0
      %483 = vmatpush.msra.mxu0 0.0
      %484 = vmatpush.msra.mxu0 0.0
      %485 = vmatpush.msra.mxu0 0.0
      %486 = vmatpush.msra.mxu0 0.0
      %487 = vmatpush.msra.mxu0 0.0
      %488 = vmatpush.msra.mxu0 0.0
      %489 = vmatpush.msra.mxu0 0.0
      %490 = vmatpush.msra.mxu0 0.0
      %491 = vmatpush.msra.mxu0 0.0
      %492 = vmatpush.msra.mxu0 %v405
      %493 = vmatmul.f32.gmra.mxu0 %v415
      %v494 = vpop.f32.mrf.mxu0
      %v495 = vadd.f32 %v411, %v494
      %496 = vdwg.mxu0
      %v497 = vmul.f32 %v435, 0.25
      %v498 = vmul.f32 %v455, 0.25
      %v499 = vmul.f32 %v475, 0.25
      %v500 = vmul.f32 %v495, 0.25
      %v505 = vrot.slane %v498, 4
      %v506 = vrot.slane %v500, 4
      %v507 = vsel %vm237, %v497, %v505
      %v508 = vsel %vm237, %v499, %v506
      %v511 = vadd.f32 %v215, %v507
      %v512 = vadd.f32 %v216, %v508
      %513 = vst [vmem:[%s5] sm:$0xff] %v511
      %514 = vst [vmem:[%s5 + $0x8] sm:$0xff] %v512
      // Predicated region
      $region45: #{sde_forward.3} parent=39 // pred_check
        %p515 = pneg %p139
      $region46: #{sde_forward.3} parent=39 // pred_check_branch
        %517 = sbr.rel (%p515) target = $region48
      $region47: #{sde_forward.3} parent=39 // pred_region
        _
      $region48: #{sde_forward.3} parent=39 // pred_fallthru
        _
      // Predicated region
      $region49: #{sde_forward.3} parent=39 // pred_check
        %p518 = pneg %p139
      $region50: #{sde_forward.3} parent=39 // pred_check_branch
        %520 = sbr.rel (%p518) target = $region52
      $region51: #{sde_forward.3} parent=39 // pred_region
        _
      $region52: #{sde_forward.3} parent=39 // pred_fallthru
        _
    $region40: #{sde_forward.3} parent=5 // pred_fallthru
      _
    %p521 = scmp.le.s32.totalorder 2, %s11
    // Predicated region
    $region53: #{sde_forward.3} parent=5 // pred_check
      %p522 = pneg %p521
    $region54: #{sde_forward.3} parent=5 // pred_check_branch
      %524 = sbr.rel (%p522) target = $region56
    $region55: #{sde_forward.3} parent=5 // pred_region
      %s525 = ssub.s32 %s11, 2
    $region56: #{sde_forward.3} parent=5 // pred_fallthru
      _
  $region6: #{sde_forward.3} parent=0 // loop_footer
    %s15 = sadd.s32 1, %s11
  $region7: #{sde_forward.3} parent=0 // loop_footer_branch
    %10 = sbr.rel target = $region3
  $region8: #{sde_forward.3} parent=0 // loop_exit
    _

</llo_original>
